<compile_context>
chip_gen: v5e
topology: v5e:2x2
jax: 0.10.0
libtpu: 0.0.40
codegen_flags: <defaults>
</compile_context>

<pallas_src>
import math
from dataclasses import dataclass, field
from functools import partial

import numpy as np
import jax
import jax.numpy as jnp
from jax import lax
from jax.experimental import pallas as pl
from jax.experimental.pallas import tpu as pltpu

KEY_EMBED = 16
VAL_EMBED = 16
EMBED = KEY_EMBED + VAL_EMBED          # 32
LANE = 128                              # TPU lane width
SUBLANE = 8                             # TPU sublane tile
PACK = LANE // EMBED                    # 4 embed-rows per lane-dense output row
MAX_TILE_ROWS = 1024                    # reshaped rows per grid step (0.5 MiB output/buffer)


@dataclass
class Pragmas:
    categorical_space: tuple = ("pipeline", "loop_merge")
    integer_space: tuple = ("unroll_factor", "tile_factor", "parallel_factor")
    mx_range: dict = field(default_factory=lambda: {
        "unroll_factor": 32, "tile_factor": 16, "parallel_factor": 8})


def init_params(pragmas: Pragmas, key):
    """Deterministic synthetic init. kaiming_uniform_ with a=sqrt(5) on an (S,1) tensor
    (fan_in=1) gives U(-1,1); Linear(1,V) weight/bias bounds are also 1, so uniform(-1,1)
    matches the torch init distribution.  Params are also packed ONCE into the dense
    block-diagonal matmul table the kernel consumes (off the forward hot path)."""
    params = {"cat": {}, "int_key": {}, "lin_w": {}, "lin_b": {}}
    cat_names, int_names = [], []
    for label in pragmas.categorical_space:
        for value in ["", "off", "flatten"]:
            name = f"{label}_{value}"
            cat_names.append(name)
            key, sub = jax.random.split(key)
            params["cat"][name] = jax.random.uniform(sub, (EMBED,), jnp.float32, -1.0, 1.0)
    for label in pragmas.integer_space:
        int_names.append(label)
        key, k1, k2, k3 = jax.random.split(key, 4)
        params["int_key"][label] = jax.random.uniform(k1, (KEY_EMBED,), jnp.float32, -1.0, 1.0)
        params["lin_w"][label] = jax.random.uniform(k2, (VAL_EMBED,), jnp.float32, -1.0, 1.0)
        params["lin_b"][label] = jax.random.uniform(k3, (VAL_EMBED,), jnp.float32, -1.0, 1.0)

    # Dense per-row tables:
    #   base row = cat_embedding                (categorical)   out = base + s * w
    #            = [int_key | lin_b]            (integer, bias pre-folded)
    #   w    row = 0                            (categorical)
    #            = [0       | lin_w]            (integer)
    row_index = {}
    base_rows, w_rows = [], []
    for i, name in enumerate(cat_names):
        row_index[name] = i
        base_rows.append(np.asarray(params["cat"][name]))
        w_rows.append(np.zeros((EMBED,), np.float32))
    for j, label in enumerate(int_names):
        row_index[label] = len(cat_names) + j
        base_rows.append(np.concatenate([np.asarray(params["int_key"][label]),
                                         np.asarray(params["lin_b"][label])]))
        w_rows.append(np.concatenate([np.zeros((KEY_EMBED,), np.float32),
                                      np.asarray(params["lin_w"][label])]))
    base_np = np.stack(base_rows).astype(np.float32)   # (T, EMBED)
    w_np = np.stack(w_rows).astype(np.float32)         # (T, EMBED)
    num_rows = base_np.shape[0]

    # Block-diagonal matmul table: for output-lane segment j (of PACK=4), contraction rows
    # [j*2*T_pad, j*2*T_pad+T_pad) hold base_table and [.. +T_pad, ..+2*T_pad) hold w_table,
    # both placed in output lanes [32j, 32j+32).  T_pad multiple of 16 keeps the contraction
    # dim (= select-matrix lane count) a multiple of 128.
    t_pad = max(16, -(-num_rows // 16) * 16)
    contract = 2 * PACK * t_pad
    diag = np.zeros((contract, LANE), np.float32)
    for j in range(PACK):
        r0 = j * 2 * t_pad
        diag[r0:r0 + num_rows, j * EMBED:(j + 1) * EMBED] = base_np
        diag[r0 + t_pad:r0 + t_pad + num_rows, j * EMBED:(j + 1) * EMBED] = w_np

    params["row_index"] = row_index
    params["t_pad"] = t_pad
    params["diag_table"] = jnp.asarray(diag)            # (2*4*T_pad, 128) f32, tiny
    return params


# ---------------------------------------------------------------------------
# Pallas kernel: fused gather + Linear(1,V) + concat + stack, lane-dense.
#   gidx[r, j] = j*2*T_pad + table_row_index of embed-row 4r+j   (base lane)
#   s   [r, j] = Linear input scalar (0 for categorical rows)
#   out [r, 32j:32j+32] = base_table[idx] + s * w_table[idx]
# Implemented as select(tile_rows, C) @ diag(C, 128) with select built from iota compares:
# value 1 at lane gidx, value s at lane gidx + T_pad.  MXU is idle filler here; the only
# N-sized HBM stream is the lane-dense output.
# ---------------------------------------------------------------------------
def keyval_gather_kernel(gidx_ref, s_ref, diag_ref, o_ref):
    tile_rows = o_ref.shape[0]
    contract = diag_ref.shape[0]
    t_pad = contract // (2 * PACK)

    gidx = gidx_ref[...]                                  # (tile_rows, PACK) int32
    s = s_ref[...]                                        # (tile_rows, PACK) f32
    col = lax.broadcasted_iota(jnp.int32, (tile_rows, contract), 1)

    sel = jnp.zeros((tile_rows, contract), jnp.float32)
    for j in range(PACK):                                 # static unroll
        g = gidx[:, j:j + 1]                              # (tile_rows, 1)
        sj = s[:, j:j + 1]                                # (tile_rows, 1)
        sel = sel + jnp.where(col == g, 1.0, 0.0)         # base coefficient
        sel = sel + jnp.where(col == g + t_pad, sj, 0.0)  # Linear(1,V) scale, in-kernel

    o_ref[...] = jnp.dot(sel, diag_ref[...], preferred_element_type=jnp.float32)


def keyval_forward_pallas(gidx2d, s2d, diag, tile_rows):
    r, _ = gidx2d.shape
    contract = diag.shape[0]
    assert r % tile_rows == 0 and tile_rows % SUBLANE == 0
    grid = (r // tile_rows,)
    idx_spec = pl.BlockSpec((tile_rows, PACK), lambda i: (i, 0))
    return pl.pallas_call(
        keyval_gather_kernel,
        out_shape=jax.ShapeDtypeStruct((r, LANE), jnp.float32),
        grid=grid,
        in_specs=[
            idx_spec,                                               # gidx (tiny)
            idx_spec,                                               # s    (tiny)
            pl.BlockSpec((contract, LANE), lambda i: (0, 0)),       # diag table, VMEM-resident
        ],
        out_specs=pl.BlockSpec((tile_rows, LANE), lambda i: (i, 0)),
        compiler_params=pltpu.CompilerParams(
            dimension_semantics=("parallel",)),   # no-op at grid=(1,); 2-TC sharding on v7x
    )(gidx2d, s2d, diag)


@partial(jax.jit, static_argnames=("n_rows", "tile_rows"))
def _keyval_embed_jit(gidx2d, s2d, diag, *, n_rows, tile_rows):
    out2d = keyval_forward_pallas(gidx2d, s2d, diag, tile_rows)
    return out2d.reshape(out2d.shape[0] * PACK, EMBED)[:n_rows]


def _reshaped_rows(n):
    """Pad N embed-rows so the lane-dense layout is (r, 128) with r % 8 == 0, and pick the
    per-step tile (whole array when it fits, else MAX_TILE_ROWS tiles)."""
    r = -(-n // PACK)                       # ceil(n / 4)
    r = -(-r // SUBLANE) * SUBLANE          # round up to multiple of 8
    if r <= MAX_TILE_ROWS:
        return r, r
    tile = MAX_TILE_ROWS
    r = -(-r // tile) * tile
    return r, tile


# ---------------------------------------------------------------------------
# Wrapper: dict dispatch (string keys, host-side) -> (idx, s) device arrays -> one jitted
# executable containing the fused Pallas kernel + the unpad slice.
# ---------------------------------------------------------------------------
def key_val_embed(x: dict, pragmas: Pragmas, params) -> jnp.ndarray:
    # TODO(synk): string-keyed dict dispatch and Python int()/float() casts have no Pallas
    # equivalent; resolved host-side to table indices + scalars, then passed as traced arrays.
    idx_list, s_list = [], []
    for key, item in x.items():
        if key in pragmas.categorical_space and item in ["off", "flatten", ""]:
            idx_list.append(params["row_index"][f"{key}_{item}"])
            s_list.append(0.0)
        elif key in pragmas.integer_space:
            scaled_value = (int(item) - 1) / pragmas.mx_range[key]
            idx_list.append(params["row_index"][key])
            s_list.append(float(int(scaled_value)))   # matches torch's int() truncation
        else:
            raise ValueError(f"Unknown Target {key} value: {item}")

    n = len(idx_list)
    r_rows, tile_rows = _reshaped_rows(n)
    n_pad = r_rows * PACK
    t_pad = params["t_pad"]

    idx_flat = np.zeros((n_pad,), np.int32)
    idx_flat[:n] = np.asarray(idx_list, np.int32)
    s_flat = np.zeros((n_pad,), np.float32)
    s_flat[:n] = np.asarray(s_list, np.float32)

    seg_off = np.arange(PACK, dtype=np.int32) * (2 * t_pad)        # per-segment lane offset
    gidx2d = idx_flat.reshape(r_rows, PACK) + seg_off[None, :]
    s2d = s_flat.reshape(r_rows, PACK)

    return _keyval_embed_jit(jnp.asarray(gidx2d), jnp.asarray(s2d), params["diag_table"],
                             n_rows=n, tile_rows=tile_rows)


if __name__ == "__main__":
    pragmas = Pragmas()
    params = init_params(pragmas, jax.random.PRNGKey(0))

    # deterministic small input dict (5 pragma keys -> 5 output rows of width 32);
    # integer values chosen to exercise nonzero scales and the int() truncation.
    x = {
        "pipeline": "off",
        "unroll_factor": 100,     # (100-1)/32 = 3.09 -> 3
        "loop_merge": "",
        "tile_factor": "37",      # (37-1)/16 = 2.25  -> 2
        "parallel_factor": 5,     # (5-1)/8   = 0.5   -> 0
    }

    out = jax.block_until_ready(key_val_embed(x, pragmas, params))

    # pure numpy reference reproducing the torch forward semantics from the RAW params
    ref_rows = []
    for key, item in x.items():
        if key in pragmas.categorical_space:
            ref_rows.append(np.asarray(params["cat"][f"{key}_{item}"]))
        else:
            s = float(int((int(item) - 1) / pragmas.mx_range[key]))
            val = np.asarray(params["lin_w"][key]) * s + np.asarray(params["lin_b"][key])
            ref_rows.append(np.concatenate([np.asarray(params["int_key"][key]), val]))
    ref = np.stack(ref_rows).astype(np.float32)

    assert out.shape == (len(x), EMBED), out.shape
    np.testing.assert_allclose(np.asarray(out), ref, rtol=1e-5, atol=1e-5)
    print("KERNEL_OK")
</pallas_src>

<mosaic_0001>
module attributes {stable_mosaic.version = 11 : i64} {
  func.func @keyval_gather_kernel(%arg0: i32, %arg1: memref<8x4xi32, #tpu.memory_space<vmem>>, %arg2: memref<8x4xf32, #tpu.memory_space<vmem>>, %arg3: memref<128x128xf32, #tpu.memory_space<vmem>>, %arg4: memref<8x128xf32, #tpu.memory_space<vmem>>) attributes {dimension_semantics = [#tpu.dimension_semantics<parallel>], iteration_bounds = array<i64: 1>, scalar_prefetch = 0 : i64, scratch_operands = 0 : i64, tpu.core_type = #tpu.core_type<tc>, window_params = [{transform_indices = @transform_0, window_bounds = array<i64: 8, 4>}, {transform_indices = @transform_1, window_bounds = array<i64: 8, 4>}, {pipeline_mode = #tpu.pipeline_mode<synchronous>, transform_indices = @transform_2, window_bounds = array<i64: 128, 128>}, {transform_indices = @transform_3, window_bounds = array<i64: 8, 128>}]} {
    %c0 = arith.constant 0 : index
    %c0_0 = arith.constant 0 : index
    %0 = vector.load %arg1[%c0, %c0_0] : memref<8x4xi32, #tpu.memory_space<vmem>>, vector<8x4xi32>
    %c0_1 = arith.constant 0 : index
    %c0_2 = arith.constant 0 : index
    %1 = vector.load %arg2[%c0_1, %c0_2] : memref<8x4xf32, #tpu.memory_space<vmem>>, vector<8x4xf32>
    %2 = tpu.iota {dimensions = array<i32: 1>} : vector<8x128xi32>
    %cst = arith.constant 0.000000e+00 : f32
    %3 = vector.broadcast %cst : f32 to vector<8x128xf32>
    %4 = vector.extract_strided_slice %0 {offsets = [0, 0], sizes = [8, 1], strides = [1, 1]} : vector<8x4xi32> to vector<8x1xi32>
    %5 = vector.extract_strided_slice %1 {offsets = [0, 0], sizes = [8, 1], strides = [1, 1]} : vector<8x4xf32> to vector<8x1xf32>
    %6 = vector.broadcast %4 : vector<8x1xi32> to vector<8x128xi32>
    %7 = arith.cmpi eq, %2, %6 : vector<8x128xi32>
    %cst_3 = arith.constant 1.000000e+00 : f32
    %cst_4 = arith.constant 0.000000e+00 : f32
    %8 = vector.broadcast %cst_3 : f32 to vector<8x128xf32>
    %9 = vector.broadcast %cst_4 : f32 to vector<8x128xf32>
    %10 = arith.select %7, %8, %9 : vector<8x128xi1>, vector<8x128xf32>
    %11 = arith.addf %3, %10 : vector<8x128xf32>
    %c16_i32 = arith.constant 16 : i32
    %12 = vector.broadcast %c16_i32 : i32 to vector<8x1xi32>
    %13 = arith.addi %4, %12 : vector<8x1xi32>
    %14 = vector.broadcast %13 : vector<8x1xi32> to vector<8x128xi32>
    %15 = arith.cmpi eq, %2, %14 : vector<8x128xi32>
    %cst_5 = arith.constant 0.000000e+00 : f32
    %16 = vector.shape_cast %5 : vector<8x1xf32> to vector<8x1xf32>
    %17 = vector.broadcast %16 : vector<8x1xf32> to vector<8x128xf32>
    %18 = vector.broadcast %cst_5 : f32 to vector<8x128xf32>
    %19 = arith.select %15, %17, %18 : vector<8x128xi1>, vector<8x128xf32>
    %20 = arith.addf %11, %19 : vector<8x128xf32>
    %21 = vector.extract_strided_slice %0 {offsets = [0, 1], sizes = [8, 1], strides = [1, 1]} : vector<8x4xi32> to vector<8x1xi32>
    %22 = vector.extract_strided_slice %1 {offsets = [0, 1], sizes = [8, 1], strides = [1, 1]} : vector<8x4xf32> to vector<8x1xf32>
    %23 = vector.broadcast %21 : vector<8x1xi32> to vector<8x128xi32>
    %24 = arith.cmpi eq, %2, %23 : vector<8x128xi32>
    %cst_6 = arith.constant 1.000000e+00 : f32
    %cst_7 = arith.constant 0.000000e+00 : f32
    %25 = vector.broadcast %cst_6 : f32 to vector<8x128xf32>
    %26 = vector.broadcast %cst_7 : f32 to vector<8x128xf32>
    %27 = arith.select %24, %25, %26 : vector<8x128xi1>, vector<8x128xf32>
    %28 = arith.addf %20, %27 : vector<8x128xf32>
    %c16_i32_8 = arith.constant 16 : i32
    %29 = vector.broadcast %c16_i32_8 : i32 to vector<8x1xi32>
    %30 = arith.addi %21, %29 : vector<8x1xi32>
    %31 = vector.broadcast %30 : vector<8x1xi32> to vector<8x128xi32>
    %32 = arith.cmpi eq, %2, %31 : vector<8x128xi32>
    %cst_9 = arith.constant 0.000000e+00 : f32
    %33 = vector.shape_cast %22 : vector<8x1xf32> to vector<8x1xf32>
    %34 = vector.broadcast %33 : vector<8x1xf32> to vector<8x128xf32>
    %35 = vector.broadcast %cst_9 : f32 to vector<8x128xf32>
    %36 = arith.select %32, %34, %35 : vector<8x128xi1>, vector<8x128xf32>
    %37 = arith.addf %28, %36 : vector<8x128xf32>
    %38 = vector.extract_strided_slice %0 {offsets = [0, 2], sizes = [8, 1], strides = [1, 1]} : vector<8x4xi32> to vector<8x1xi32>
    %39 = vector.extract_strided_slice %1 {offsets = [0, 2], sizes = [8, 1], strides = [1, 1]} : vector<8x4xf32> to vector<8x1xf32>
    %40 = vector.broadcast %38 : vector<8x1xi32> to vector<8x128xi32>
    %41 = arith.cmpi eq, %2, %40 : vector<8x128xi32>
    %cst_10 = arith.constant 1.000000e+00 : f32
    %cst_11 = arith.constant 0.000000e+00 : f32
    %42 = vector.broadcast %cst_10 : f32 to vector<8x128xf32>
    %43 = vector.broadcast %cst_11 : f32 to vector<8x128xf32>
    %44 = arith.select %41, %42, %43 : vector<8x128xi1>, vector<8x128xf32>
    %45 = arith.addf %37, %44 : vector<8x128xf32>
    %c16_i32_12 = arith.constant 16 : i32
    %46 = vector.broadcast %c16_i32_12 : i32 to vector<8x1xi32>
    %47 = arith.addi %38, %46 : vector<8x1xi32>
    %48 = vector.broadcast %47 : vector<8x1xi32> to vector<8x128xi32>
    %49 = arith.cmpi eq, %2, %48 : vector<8x128xi32>
    %cst_13 = arith.constant 0.000000e+00 : f32
    %50 = vector.shape_cast %39 : vector<8x1xf32> to vector<8x1xf32>
    %51 = vector.broadcast %50 : vector<8x1xf32> to vector<8x128xf32>
    %52 = vector.broadcast %cst_13 : f32 to vector<8x128xf32>
    %53 = arith.select %49, %51, %52 : vector<8x128xi1>, vector<8x128xf32>
    %54 = arith.addf %45, %53 : vector<8x128xf32>
    %55 = vector.extract_strided_slice %0 {offsets = [0, 3], sizes = [8, 1], strides = [1, 1]} : vector<8x4xi32> to vector<8x1xi32>
    %56 = vector.extract_strided_slice %1 {offsets = [0, 3], sizes = [8, 1], strides = [1, 1]} : vector<8x4xf32> to vector<8x1xf32>
    %57 = vector.broadcast %55 : vector<8x1xi32> to vector<8x128xi32>
    %58 = arith.cmpi eq, %2, %57 : vector<8x128xi32>
    %cst_14 = arith.constant 1.000000e+00 : f32
    %cst_15 = arith.constant 0.000000e+00 : f32
    %59 = vector.broadcast %cst_14 : f32 to vector<8x128xf32>
    %60 = vector.broadcast %cst_15 : f32 to vector<8x128xf32>
    %61 = arith.select %58, %59, %60 : vector<8x128xi1>, vector<8x128xf32>
    %62 = arith.addf %54, %61 : vector<8x128xf32>
    %c16_i32_16 = arith.constant 16 : i32
    %63 = vector.broadcast %c16_i32_16 : i32 to vector<8x1xi32>
    %64 = arith.addi %55, %63 : vector<8x1xi32>
    %65 = vector.broadcast %64 : vector<8x1xi32> to vector<8x128xi32>
    %66 = arith.cmpi eq, %2, %65 : vector<8x128xi32>
    %cst_17 = arith.constant 0.000000e+00 : f32
    %67 = vector.shape_cast %56 : vector<8x1xf32> to vector<8x1xf32>
    %68 = vector.broadcast %67 : vector<8x1xf32> to vector<8x128xf32>
    %69 = vector.broadcast %cst_17 : f32 to vector<8x128xf32>
    %70 = arith.select %66, %68, %69 : vector<8x128xi1>, vector<8x128xf32>
    %71 = arith.addf %62, %70 : vector<8x128xf32>
    %c0_18 = arith.constant 0 : index
    %c0_19 = arith.constant 0 : index
    %72 = vector.load %arg3[%c0_18, %c0_19] : memref<128x128xf32, #tpu.memory_space<vmem>>, vector<128x128xf32>
    %cst_20 = arith.constant dense<0.000000e+00> : vector<8x128xf32>
    %73 = tpu.matmul %71, %72, %cst_20 {dimension_numbers = #tpu.dot_dimension_numbers<[1], [0], [0], [1], [0, 0, 1, 1], [], []>} : vector<8x128xf32>, vector<128x128xf32>, vector<8x128xf32> -> vector<8x128xf32>
    %c0_21 = arith.constant 0 : index
    %c0_22 = arith.constant 0 : index
    %74 = vector.load %arg4[%c0_21, %c0_22] : memref<8x128xf32, #tpu.memory_space<vmem>>, vector<8x128xf32>
    tpu.vector_store %arg4[%c0_21, %c0_22], %73 {strides = array<i32>} : memref<8x128xf32, #tpu.memory_space<vmem>>, vector<8x128xf32>,
    return
  }
  func.func @transform_0(%arg0: i32) -> (i32, i32) {
    %c0_i32 = arith.constant 0 : i32
    %c0_i32_0 = arith.constant 0 : i32
    return %arg0, %c0_i32 : i32, i32
  }
  func.func @transform_1(%arg0: i32) -> (i32, i32) {
    %c0_i32 = arith.constant 0 : i32
    %c0_i32_0 = arith.constant 0 : i32
    return %arg0, %c0_i32 : i32, i32
  }
  func.func @transform_2(%arg0: i32) -> (i32, i32) {
    %c0_i32 = arith.constant 0 : i32
    %c0_i32_0 = arith.constant 0 : i32
    %c0_i32_1 = arith.constant 0 : i32
    return %c0_i32, %c0_i32_0 : i32, i32
  }
  func.func @transform_3(%arg0: i32) -> (i32, i32) {
    %c0_i32 = arith.constant 0 : i32
    %c0_i32_0 = arith.constant 0 : i32
    return %arg0, %c0_i32 : i32, i32
  }
}

</mosaic_0001>

<llo_original>
// kernel: _keyval_embed_jit.1
$region0: #{_keyval_embed_jit.1}
  #allocation0 [shape = 'u32[]', space=smem, size = 0x4, offset = 0x4, fixed_abs, tag = 'smem constant byte address 0x4 - core index']
  #allocation1 [shape = 'u32[72,128]{1,0:T(1,128)}', space=vmem, size = 0x9000, scoped, tag = 'internal scratch']
  %s0 = inlined_call_operand.vmem [shape: s32[8,4], index: 0, kind: input, shape index: {}]
  %s1 = inlined_call_operand.vmem [shape: f32[8,4], index: 1, kind: input, shape index: {}]
  %s2 = inlined_call_operand.hbm [shape: f32[128,128], index: 2, kind: input, shape index: {}]
  %s3 = inlined_call_operand.vmem [shape: f32[8,128], index: 3, kind: output, shape index: {}]
  %s4 = sld [smem:[#allocation0]]
  $region26: #{_keyval_embed_jit.1} parent=0
    _
  %s6 = ssub.s32 1, %s4
  %s7 = scalar_select 0, %s6, %s4
  $region1: #{_keyval_embed_jit.1} parent=0
    #allocation2 [shape = 'u8[65536]{0}', space=vmem, size = 0x10000, scoped, tag = 'input window, operand 2, single buffered']
    #allocation3 [shape = 's32[1]{0}', space=sflag, size = 0x4, scoped, tag = 'scoped memory for _keyval_embed_jit.1']
    %8 = vsyncpa [#allocation3], 0
    // Predicated region
    $region2: #{_keyval_embed_jit.1} parent=1 // pred_check
      _
    $region3: #{_keyval_embed_jit.1} parent=1 // pred_check_branch
      %10 = sbr.rel (0) target = $region5
    $region4: #{_keyval_embed_jit.1} parent=1 // pred_region
      _
    $region5: #{_keyval_embed_jit.1} parent=1 // pred_fallthru
      _
    // Predicated region
    $region6: #{_keyval_embed_jit.1} parent=1 // pred_check
      _
    $region7: #{_keyval_embed_jit.1} parent=1 // pred_check_branch
      %12 = sbr.rel (0) target = $region9
    $region8: #{_keyval_embed_jit.1} parent=1 // pred_region
      _
    $region9: #{_keyval_embed_jit.1} parent=1 // pred_fallthru
      _
    // Predicated region
    $region10: #{_keyval_embed_jit.1} parent=1 // pred_check
      _
    $region11: #{_keyval_embed_jit.1} parent=1 // pred_check_branch
      %14 = sbr.rel (0) target = $region13
    $region12: #{_keyval_embed_jit.1} parent=1 // pred_region
      %16 = vsyncadd [#allocation3], 0
      %s17 = sshll.u32 %s2, 4
      %s18 = int_to_ptr.hbm [resolvable:$true] %s17
      %s19 = sshll.u32 [#allocation2], 4
      %s20 = int_to_ptr.vmem [resolvable:$true] %s19
      %25 = dma.hbm_to_vmem [thread:$0]  %s18, 2048, %s20, [#allocation3], 128, 128, 8
    $region13: #{_keyval_embed_jit.1} parent=1 // pred_fallthru
      _
    // Predicated region
    $region14: #{_keyval_embed_jit.1} parent=1 // pred_check
      _
    $region15: #{_keyval_embed_jit.1} parent=1 // pred_check_branch
      %27 = sbr.rel (0) target = $region17
    $region16: #{_keyval_embed_jit.1} parent=1 // pred_region
      %29 = dma.done [#allocation3], 2048
    $region17: #{_keyval_embed_jit.1} parent=1 // pred_fallthru
      _
    %v30 = vld [vmem:[%s0] sm:$0xff]
    %v31 = vld [vmem:[%s1] sm:$0xff]
    %v32 = vlaneseq
    %v33 = vand.u32 %v32, 127
    %34 = vset.pattern.permute.xlu0 0
    %35 = vperm.xlu0 %34, %v30
    %v36 = vpop.permute.xlu0 %35
    %vm37 = vcmp.eq.s32.totalorder %v33, %v36
    %v38 = vsel %vm37, 1.0, 0.0
    %v39 = vadd.f32 %v38, 0.0
    %v40 = vadd.s32 %v30, 16
    %41 = vset.pattern.permute.xlu0 0
    %42 = vperm.xlu0 %41, %v40
    %v43 = vpop.permute.xlu0 %42
    %vm44 = vcmp.eq.s32.totalorder %v33, %v43
    %46 = vset.pattern.permute.xlu0 0
    %47 = vperm.xlu0 %46, %v31
    %v48 = vpop.permute.xlu0 %47
    %v50 = vsel %vm44, %v48, 0.0
    %v51 = vadd.f32 %v39, %v50
    %52 = vset.pattern.permute.xlu0 1
    %53 = vperm.xlu0 %52, %v30
    %v54 = vpop.permute.xlu0 %53
    %vm55 = vcmp.eq.s32.totalorder %v33, %v54
    %v56 = vsel %vm55, 1.0, 0.0
    %v57 = vadd.f32 %v51, %v56
    %58 = vset.pattern.permute.xlu0 1
    %59 = vperm.xlu0 %58, %v40
    %v60 = vpop.permute.xlu0 %59
    %vm61 = vcmp.eq.s32.totalorder %v33, %v60
    %62 = vset.pattern.permute.xlu0 1
    %63 = vperm.xlu0 %62, %v31
    %v64 = vpop.permute.xlu0 %63
    %v66 = vsel %vm61, %v64, 0.0
    %v67 = vadd.f32 %v57, %v66
    %68 = vset.pattern.permute.xlu0 2
    %69 = vperm.xlu0 %68, %v30
    %v70 = vpop.permute.xlu0 %69
    %vm71 = vcmp.eq.s32.totalorder %v33, %v70
    %v72 = vsel %vm71, 1.0, 0.0
    %v73 = vadd.f32 %v67, %v72
    %74 = vset.pattern.permute.xlu0 2
    %75 = vperm.xlu0 %74, %v40
    %v76 = vpop.permute.xlu0 %75
    %vm77 = vcmp.eq.s32.totalorder %v33, %v76
    %78 = vset.pattern.permute.xlu0 2
    %79 = vperm.xlu0 %78, %v31
    %v80 = vpop.permute.xlu0 %79
    %v82 = vsel %vm77, %v80, 0.0
    %v83 = vadd.f32 %v73, %v82
    %84 = vset.pattern.permute.xlu0 3
    %85 = vperm.xlu0 %84, %v30
    %v86 = vpop.permute.xlu0 %85
    %vm87 = vcmp.eq.s32.totalorder %v33, %v86
    %v88 = vsel %vm87, 1.0, 0.0
    %v89 = vadd.f32 %v83, %v88
    %90 = vset.pattern.permute.xlu0 3
    %91 = vperm.xlu0 %90, %v40
    %v92 = vpop.permute.xlu0 %91
    %vm93 = vcmp.eq.s32.totalorder %v33, %v92
    %94 = vset.pattern.permute.xlu0 3
    %95 = vperm.xlu0 %94, %v31
    %v96 = vpop.permute.xlu0 %95
    %v98 = vsel %vm93, %v96, 0.0
    %v99 = vadd.f32 %v89, %v98
    %v100 = vld [vmem:[#allocation2] sm:$0xff]
    %v101 = vld [vmem:[#allocation2 + $0x8] sm:$0xff]
    %v102 = vld [vmem:[#allocation2 + $0x10] sm:$0xff]
    %v103 = vld [vmem:[#allocation2 + $0x18] sm:$0xff]
    %v104 = vld [vmem:[#allocation2 + $0x20] sm:$0xff]
    %v105 = vld [vmem:[#allocation2 + $0x28] sm:$0xff]
    %v106 = vld [vmem:[#allocation2 + $0x30] sm:$0xff]
    %v107 = vld [vmem:[#allocation2 + $0x38] sm:$0xff]
    %v108 = vld [vmem:[#allocation2 + $0x40] sm:$0xff]
    %v109 = vld [vmem:[#allocation2 + $0x48] sm:$0xff]
    %v110 = vld [vmem:[#allocation2 + $0x50] sm:$0xff]
    %v111 = vld [vmem:[#allocation2 + $0x58] sm:$0xff]
    %v112 = vld [vmem:[#allocation2 + $0x60] sm:$0xff]
    %v113 = vld [vmem:[#allocation2 + $0x68] sm:$0xff]
    %v114 = vld [vmem:[#allocation2 + $0x70] sm:$0xff]
    %v115 = vld [vmem:[#allocation2 + $0x78] sm:$0xff]
    %116 = vmatpush.msra.mxu0 %v115
    %117 = vmatpush.msra.mxu0 %v114
    %118 = vmatpush.msra.mxu0 %v113
    %119 = vmatpush.msra.mxu0 %v112
    %120 = vmatpush.msra.mxu0 %v111
    %121 = vmatpush.msra.mxu0 %v110
    %122 = vmatpush.msra.mxu0 %v109
    %123 = vmatpush.msra.mxu0 %v108
    %124 = vmatpush.msra.mxu0 %v107
    %125 = vmatpush.msra.mxu0 %v106
    %126 = vmatpush.msra.mxu0 %v105
    %127 = vmatpush.msra.mxu0 %v104
    %128 = vmatpush.msra.mxu0 %v103
    %129 = vmatpush.msra.mxu0 %v102
    %130 = vmatpush.msra.mxu0 %v101
    %131 = vmatpush.msra.mxu0 %v100
    %132 = vmatmul.f32.gmra.mxu0 %v99
    %v133 = vpop.f32.mrf.mxu0
    %v134 = vadd.f32 0.0, %v133
    %135 = vdwg.mxu0
    %136 = vst [vmem:[%s3] sm:$0xff] %v134
    // Predicated region
    $region18: #{_keyval_embed_jit.1} parent=1 // pred_check
      _
    $region19: #{_keyval_embed_jit.1} parent=1 // pred_check_branch
      %138 = sbr.rel (0) target = $region21
    $region20: #{_keyval_embed_jit.1} parent=1 // pred_region
      _
    $region21: #{_keyval_embed_jit.1} parent=1 // pred_fallthru
      _
    // Predicated region
    $region22: #{_keyval_embed_jit.1} parent=1 // pred_check
      _
    $region23: #{_keyval_embed_jit.1} parent=1 // pred_check_branch
      %140 = sbr.rel (0) target = $region25
    $region24: #{_keyval_embed_jit.1} parent=1 // pred_region
      _
    $region25: #{_keyval_embed_jit.1} parent=1 // pred_fallthru
      _
    %141 = vsyncpa [#allocation3], 1

</llo_original>
